<compile_context>
chip_gen: v7x
topology: tpu7x:2x2x1
jax: 0.10.0
libtpu: 0.0.40
codegen_flags: <defaults>
</compile_context>

<pallas_src>
import jax
import jax.numpy as jnp
from jax.experimental import pallas as pl
from jax.experimental.pallas import tpu as pltpu


def _round_up(v, m):
    return ((v + m - 1) // m) * m


def _residual_linear_kernel(x_ref, w_ref, b_ref, prev_ref, o_ref):
    # out = x @ W + b + prev   (MXU matmul with f32 accumulation, VPU adds)
    acc = jnp.dot(x_ref[...], w_ref[...], preferred_element_type=jnp.float32)
    acc = acc + b_ref[...].astype(jnp.float32) + prev_ref[...].astype(jnp.float32)
    o_ref[...] = acc.astype(o_ref.dtype)


def _choose_tile_m(M, K_pad, N_pad, itemsize, budget_bytes=24 * 1024 * 1024):
    """Largest row tile (<=1024) whose double-buffered working set fits budget."""
    m8 = _round_up(M, 8)
    for tm in (1024, 512, 256):
        if tm > m8:
            continue
        # 2x (x + prev + out) tiles (double-buffered) + resident weight + bias.
        resident = (2 * tm * (K_pad + 2 * N_pad) + K_pad * N_pad + N_pad) * itemsize
        if resident <= budget_bytes:
            return tm
    return min(m8, 256)


def residual_layer(x, prev, weight, bias):
    """x: [B, S, in], prev: [B, S, out], weight: [in, out], bias: [out]."""
    B, S, K = x.shape
    Kw, N = weight.shape
    assert Kw == K, "weight must be [in_features, out_features]"
    M = B * S

    out_dtype = x.dtype
    itemsize = jnp.dtype(out_dtype).itemsize

    # Lane-dense last dims: pad K and N up to multiples of 128.
    K_pad = _round_up(K, 128)
    N_pad = _round_up(N, 128)

    tm = _choose_tile_m(M, K_pad, N_pad, itemsize)
    M_pad = _round_up(M, tm)
    grid_m = M_pad // tm

    # Zero-pad operands (padded K rows/cols are zero => matmul unaffected;
    # padded M rows / N cols are sliced off below).
    x2 = jnp.pad(x.reshape(M, K), ((0, M_pad - M), (0, K_pad - K)))
    prev2 = jnp.pad(prev.reshape(M, N).astype(out_dtype),
                    ((0, M_pad - M), (0, N_pad - N)))
    w2 = jnp.pad(weight.astype(out_dtype), ((0, K_pad - K), (0, N_pad - N)))
    b2 = jnp.pad(bias.astype(out_dtype).reshape(1, N), ((0, 0), (0, N_pad - N)))

    # VMEM budget: computed working set with 2x headroom, capped at 32 MiB
    # (safe on v5e/v6e's 128 MiB and v7x's 64 MiB physical VMEM).
    resident = (2 * tm * (K_pad + 2 * N_pad) + K_pad * N_pad + N_pad) * itemsize
    vmem_limit = int(min(max(2 * resident, 8 * 1024 * 1024), 32 * 1024 * 1024))

    cost = pl.CostEstimate(
        flops=2 * M_pad * N_pad * K_pad,
        transcendentals=0,
        bytes_accessed=itemsize * (M_pad * K_pad + K_pad * N_pad + N_pad
                                   + 2 * M_pad * N_pad),
    )

    out2 = pl.pallas_call(
        _residual_linear_kernel,
        out_shape=jax.ShapeDtypeStruct((M_pad, N_pad), out_dtype),
        grid_spec=pltpu.PrefetchScalarGridSpec(
            num_scalar_prefetch=0,
            grid=(grid_m,),
            in_specs=[
                pl.BlockSpec((tm, K_pad), lambda i: (i, 0)),      # x row tile
                pl.BlockSpec((K_pad, N_pad), lambda i: (0, 0)),   # weight (resident)
                pl.BlockSpec((1, N_pad), lambda i: (0, 0)),       # bias   (resident)
                pl.BlockSpec((tm, N_pad), lambda i: (i, 0)),      # prev row tile
            ],
            out_specs=pl.BlockSpec((tm, N_pad), lambda i: (i, 0)),
        ),
        compiler_params=pltpu.CompilerParams(
            dimension_semantics=("parallel",),  # row tiles shard across v7x's 2 TCs
            vmem_limit_bytes=vmem_limit,
        ),
        cost_estimate=cost,
        # prev tile is read then overwritten by the same output tile: safe to alias.
        input_output_aliases={3: 0},
    )(x2, w2, b2, prev2)

    return out2[:M, :N].reshape(B, S, N)


if __name__ == "__main__":
    # Small shapes consistent with the module: batch=2, seq=8, hidden=32.
    batch, seq, in_features, out_features = 2, 8, 32, 32

    key = jax.random.PRNGKey(0)
    kx, kp, kw = jax.random.split(key, 3)

    x = jax.random.normal(kx, (batch, seq, in_features), dtype=jnp.float32)
    prev = jax.random.normal(kp, (batch, seq, out_features), dtype=jnp.float32)

    # Deterministic parameter init: weight ~ uniform (like nn.Linear default
    # scale), bias constant 0.0 (per LinearLayer's nn.init.constant_(bias, 0.0)).
    bound = 1.0 / (in_features ** 0.5)
    weight = jax.random.uniform(
        kw, (in_features, out_features), dtype=jnp.float32,
        minval=-bound, maxval=bound)
    bias = jnp.zeros((out_features,), dtype=jnp.float32)

    out = residual_layer(x, prev, weight, bias)
    jax.block_until_ready(out)

    # Reference check (plain JAX) to make sure semantics match.
    ref = x @ weight + bias + prev
    assert out.shape == ref.shape, "shape mismatch vs reference"
    assert jnp.allclose(out, ref, atol=1e-5, rtol=1e-5), "mismatch vs reference"

    print("KERNEL_OK")
</pallas_src>

<mosaic_0001>
module attributes {stable_mosaic.version = 11 : i64} {
  func.func @_residual_linear_kernel(%arg0: i32, %arg1: memref<16x128xf32, #tpu.memory_space<vmem>>, %arg2: memref<128x128xf32, #tpu.memory_space<vmem>>, %arg3: memref<1x128xf32, #tpu.memory_space<vmem>>, %arg4: memref<16x128xf32, #tpu.memory_space<vmem>>, %arg5: memref<16x128xf32, #tpu.memory_space<vmem>>) attributes {dimension_semantics = [#tpu.dimension_semantics<parallel>], iteration_bounds = array<i64: 1>, scalar_prefetch = 0 : i64, scratch_operands = 0 : i64, tpu.core_type = #tpu.core_type<tc>, window_params = [{transform_indices = @transform_0, window_bounds = array<i64: 16, 128>}, {pipeline_mode = #tpu.pipeline_mode<synchronous>, transform_indices = @transform_1, window_bounds = array<i64: 128, 128>}, {pipeline_mode = #tpu.pipeline_mode<synchronous>, transform_indices = @transform_2, window_bounds = array<i64: 1, 128>}, {transform_indices = @transform_3, window_bounds = array<i64: 16, 128>}, {transform_indices = @transform_4, window_bounds = array<i64: 16, 128>}]} {
    %c0 = arith.constant 0 : index
    %c0_0 = arith.constant 0 : index
    %0 = vector.load %arg1[%c0, %c0_0] : memref<16x128xf32, #tpu.memory_space<vmem>>, vector<16x128xf32>
    %c0_1 = arith.constant 0 : index
    %c0_2 = arith.constant 0 : index
    %1 = vector.load %arg2[%c0_1, %c0_2] : memref<128x128xf32, #tpu.memory_space<vmem>>, vector<128x128xf32>
    %cst = arith.constant dense<0.000000e+00> : vector<16x128xf32>
    %2 = tpu.matmul %0, %1, %cst {dimension_numbers = #tpu.dot_dimension_numbers<[1], [0], [0], [1], [0, 0, 1, 1], [], []>} : vector<16x128xf32>, vector<128x128xf32>, vector<16x128xf32> -> vector<16x128xf32>
    %c0_3 = arith.constant 0 : index
    %c0_4 = arith.constant 0 : index
    %3 = vector.load %arg3[%c0_3, %c0_4] : memref<1x128xf32, #tpu.memory_space<vmem>>, vector<1x128xf32>
    %4 = vector.broadcast %3 : vector<1x128xf32> to vector<16x128xf32>
    %5 = arith.addf %2, %4 : vector<16x128xf32>
    %c0_5 = arith.constant 0 : index
    %c0_6 = arith.constant 0 : index
    %6 = vector.load %arg4[%c0_5, %c0_6] : memref<16x128xf32, #tpu.memory_space<vmem>>, vector<16x128xf32>
    %7 = arith.addf %5, %6 : vector<16x128xf32>
    %c0_7 = arith.constant 0 : index
    %c0_8 = arith.constant 0 : index
    %8 = vector.load %arg5[%c0_7, %c0_8] : memref<16x128xf32, #tpu.memory_space<vmem>>, vector<16x128xf32>
    tpu.vector_store %arg5[%c0_7, %c0_8], %7 {strides = array<i32>} : memref<16x128xf32, #tpu.memory_space<vmem>>, vector<16x128xf32>,
    return
  }
  func.func @transform_0(%arg0: i32) -> (i32, i32) {
    %c0_i32 = arith.constant 0 : i32
    %c0_i32_0 = arith.constant 0 : i32
    return %arg0, %c0_i32 : i32, i32
  }
  func.func @transform_1(%arg0: i32) -> (i32, i32) {
    %c0_i32 = arith.constant 0 : i32
    %c0_i32_0 = arith.constant 0 : i32
    %c0_i32_1 = arith.constant 0 : i32
    return %c0_i32, %c0_i32_0 : i32, i32
  }
  func.func @transform_2(%arg0: i32) -> (i32, i32) {
    %c0_i32 = arith.constant 0 : i32
    %c0_i32_0 = arith.constant 0 : i32
    %c0_i32_1 = arith.constant 0 : i32
    return %c0_i32, %c0_i32_0 : i32, i32
  }
  func.func @transform_3(%arg0: i32) -> (i32, i32) {
    %c0_i32 = arith.constant 0 : i32
    %c0_i32_0 = arith.constant 0 : i32
    return %arg0, %c0_i32 : i32, i32
  }
  func.func @transform_4(%arg0: i32) -> (i32, i32) {
    %c0_i32 = arith.constant 0 : i32
    %c0_i32_0 = arith.constant 0 : i32
    return %arg0, %c0_i32 : i32, i32
  }
}

</mosaic_0001>

<llo_original>
// kernel: tpu_custom_call.1
$region0: #{tpu_custom_call.1}
  #allocation0 [shape = 'u32[]', space=smem, size = 0x4, offset = 0x4, fixed_abs, tag = 'smem constant byte address 0x4 - core index']
  #allocation1 [shape = 'u32[144,128]{1,0:T(1,128)}', space=vmem, size = 0x12000, scoped, tag = 'internal scratch']
  %s0 = inlined_call_operand.vmem [shape: f32[16,128], index: 0, kind: input, shape index: {}]
  %s1 = inlined_call_operand.hbm [shape: f32[128,128], index: 1, kind: input, shape index: {}]
  %s2 = inlined_call_operand.vmem [shape: f32[1,128], index: 2, kind: input, shape index: {}]
  %s3 = inlined_call_operand.hbm [shape: f32[16,128], index: 3, kind: input, shape index: {}, may-alias: {3,4}]
  %s4 = inlined_call_operand.hbm [shape: f32[16,128], index: 4, kind: output, shape index: {}, may-alias: {3,4}]
  %s5 = sld [smem:[#allocation0]]
  $region34: #{tpu_custom_call.1} parent=0
    _
  %s7 = ssub.s32 1, %s5
  %s8 = scalar_select 0, %s7, %s5
  $region1: #{tpu_custom_call.1} parent=0
    #allocation2 [shape = 'u8[65536]{0}', space=vmem, size = 0x10000, scoped, tag = 'input window, operand 1, single buffered']
    #allocation3 [shape = 's32[1]{0}', space=sflag, size = 0x4, scoped, tag = 'scoped memory for tpu_custom_call.1']
    #allocation4 [shape = 's32[1]{0}', space=sflag, size = 0x4, scoped, tag = 'scoped memory for tpu_custom_call.1']
    #allocation5 [shape = 'u8[8192]{0}', space=vmem, size = 0x2000, scoped, tag = 'input window, operand 3, single buffered']
    #allocation6 [shape = 's32[1]{0}', space=sflag, size = 0x4, scoped, tag = 'scoped memory for tpu_custom_call.1']
    #allocation7 [shape = 'u8[8192]{0}', space=vmem, size = 0x2000, scoped, tag = 'output window, operand 0, single buffered']
    %9 = vsyncpa [#allocation3], 0
    %10 = vsyncpa [#allocation6], 0
    %11 = vsyncpa [#allocation4], 0
    // Predicated region
    $region2: #{tpu_custom_call.1} parent=1 // pred_check
      _
    $region3: #{tpu_custom_call.1} parent=1 // pred_check_branch
      %13 = sbr.rel (0) target = $region5
    $region4: #{tpu_custom_call.1} parent=1 // pred_region
      _
    $region5: #{tpu_custom_call.1} parent=1 // pred_fallthru
      _
    // Predicated region
    $region6: #{tpu_custom_call.1} parent=1 // pred_check
      _
    $region7: #{tpu_custom_call.1} parent=1 // pred_check_branch
      %15 = sbr.rel (0) target = $region9
    $region8: #{tpu_custom_call.1} parent=1 // pred_region
      %s17 = ssub.s32 2048, 2048
      %18 = vsyncadd [#allocation3], %s17
      %s19 = sshll.u32 [#allocation2], 4
      %s20 = int_to_ptr.vmem [resolvable:$true] %s19
      %25 = dma.hbm_to_vmem [thread:$0]  %s1, 2048, %s20, [#allocation3], 128, 128, 8
    $region9: #{tpu_custom_call.1} parent=1 // pred_fallthru
      _
    // Predicated region
    $region10: #{tpu_custom_call.1} parent=1 // pred_check
      _
    $region11: #{tpu_custom_call.1} parent=1 // pred_check_branch
      %27 = sbr.rel (0) target = $region13
    $region12: #{tpu_custom_call.1} parent=1 // pred_region
      _
    $region13: #{tpu_custom_call.1} parent=1 // pred_fallthru
      _
    // Predicated region
    $region14: #{tpu_custom_call.1} parent=1 // pred_check
      _
    $region15: #{tpu_custom_call.1} parent=1 // pred_check_branch
      %29 = sbr.rel (0) target = $region17
    $region16: #{tpu_custom_call.1} parent=1 // pred_region
      %s31 = ssub.s32 256, 256
      %32 = vsyncadd [#allocation6], %s31
      %s33 = sshll.u32 [#allocation5], 4
      %s34 = int_to_ptr.vmem [resolvable:$true] %s33
      %39 = dma.hbm_to_vmem [thread:$0]  %s3, 256, %s34, [#allocation6], 128, 128, 8
    $region17: #{tpu_custom_call.1} parent=1 // pred_fallthru
      _
    // Predicated region
    $region18: #{tpu_custom_call.1} parent=1 // pred_check
      _
    $region19: #{tpu_custom_call.1} parent=1 // pred_check_branch
      %41 = sbr.rel (0) target = $region21
    $region20: #{tpu_custom_call.1} parent=1 // pred_region
      %42 = dma.done [#allocation3], 2048
    $region21: #{tpu_custom_call.1} parent=1 // pred_fallthru
      _
    // Predicated region
    $region22: #{tpu_custom_call.1} parent=1 // pred_check
      _
    $region23: #{tpu_custom_call.1} parent=1 // pred_check_branch
      %44 = sbr.rel (0) target = $region25
    $region24: #{tpu_custom_call.1} parent=1 // pred_region
      %45 = dma.done [#allocation6], 256
    $region25: #{tpu_custom_call.1} parent=1 // pred_fallthru
      _
    %v46 = vld [vmem:[%s0] sm:$0xff]
    %v47 = vld [vmem:[%s0 + $0x8] sm:$0xff]
    %v48 = vld [vmem:[#allocation2] sm:$0xff]
    %v49 = vld [vmem:[#allocation2 + $0x8] sm:$0xff]
    %v50 = vld [vmem:[#allocation2 + $0x10] sm:$0xff]
    %v51 = vld [vmem:[#allocation2 + $0x18] sm:$0xff]
    %v52 = vld [vmem:[#allocation2 + $0x20] sm:$0xff]
    %v53 = vld [vmem:[#allocation2 + $0x28] sm:$0xff]
    %v54 = vld [vmem:[#allocation2 + $0x30] sm:$0xff]
    %v55 = vld [vmem:[#allocation2 + $0x38] sm:$0xff]
    %v56 = vld [vmem:[#allocation2 + $0x40] sm:$0xff]
    %v57 = vld [vmem:[#allocation2 + $0x48] sm:$0xff]
    %v58 = vld [vmem:[#allocation2 + $0x50] sm:$0xff]
    %v59 = vld [vmem:[#allocation2 + $0x58] sm:$0xff]
    %v60 = vld [vmem:[#allocation2 + $0x60] sm:$0xff]
    %v61 = vld [vmem:[#allocation2 + $0x68] sm:$0xff]
    %v62 = vld [vmem:[#allocation2 + $0x70] sm:$0xff]
    %v63 = vld [vmem:[#allocation2 + $0x78] sm:$0xff]
    %v64 = vld [vmem:[%s2] sm:$0x1]
    %v66 = vlaneseq
    %v67 = vshrl.u32 %v66, 7
    %v68 = vsub.s32 0, %v67
    %v69 = vrot.slane %v64, %v68
    %71 = vmatprep.subr.mxu0 0.0
    %72 = vmatpush1.msra.mxu0 %v48
    %73 = vmatprep.subr.mxu0 0.0
    %74 = vmatpush1.msra.mxu0 %v49
    %75 = vmatprep.subr.mxu0 0.0
    %76 = vmatpush1.msra.mxu0 %v50
    %77 = vmatprep.subr.mxu0 0.0
    %78 = vmatpush1.msra.mxu0 %v51
    %79 = vmatprep.subr.mxu0 0.0
    %80 = vmatpush1.msra.mxu0 %v52
    %81 = vmatprep.subr.mxu0 0.0
    %82 = vmatpush1.msra.mxu0 %v53
    %83 = vmatprep.subr.mxu0 0.0
    %84 = vmatpush1.msra.mxu0 %v54
    %85 = vmatprep.subr.mxu0 0.0
    %86 = vmatpush1.msra.mxu0 %v55
    %87 = vmatprep.subr.mxu0 0.0
    %88 = vmatpush1.msra.mxu0 %v56
    %89 = vmatprep.subr.mxu0 0.0
    %90 = vmatpush1.msra.mxu0 %v57
    %91 = vmatprep.subr.mxu0 0.0
    %92 = vmatpush1.msra.mxu0 %v58
    %93 = vmatprep.subr.mxu0 0.0
    %94 = vmatpush1.msra.mxu0 %v59
    %95 = vmatprep.subr.mxu0 0.0
    %96 = vmatpush1.msra.mxu0 %v60
    %97 = vmatprep.subr.mxu0 0.0
    %98 = vmatpush1.msra.mxu0 %v61
    %99 = vmatprep.subr.mxu0 0.0
    %100 = vmatpush1.msra.mxu0 %v62
    %101 = vmatprep.subr.mxu0 0.0
    %102 = vmatpush1.msra.mxu0 %v63
    %103 = vmatprep.subr.mxu0 0.0
    %104 = vmatpush1.msra.mxu0 0.0
    %105 = vmatprep.subr.mxu0 0.0
    %106 = vmatpush1.msra.mxu0 0.0
    %107 = vmatprep.subr.mxu0 0.0
    %108 = vmatpush1.msra.mxu0 0.0
    %109 = vmatprep.subr.mxu0 0.0
    %110 = vmatpush1.msra.mxu0 0.0
    %111 = vmatprep.subr.mxu0 0.0
    %112 = vmatpush1.msra.mxu0 0.0
    %113 = vmatprep.subr.mxu0 0.0
    %114 = vmatpush1.msra.mxu0 0.0
    %115 = vmatprep.subr.mxu0 0.0
    %116 = vmatpush1.msra.mxu0 0.0
    %117 = vmatprep.subr.mxu0 0.0
    %118 = vmatpush1.msra.mxu0 0.0
    %119 = vmatprep.subr.mxu0 0.0
    %120 = vmatpush1.msra.mxu0 0.0
    %121 = vmatprep.subr.mxu0 0.0
    %122 = vmatpush1.msra.mxu0 0.0
    %123 = vmatprep.subr.mxu0 0.0
    %124 = vmatpush1.msra.mxu0 0.0
    %125 = vmatprep.subr.mxu0 0.0
    %126 = vmatpush1.msra.mxu0 0.0
    %127 = vmatprep.subr.mxu0 0.0
    %128 = vmatpush1.msra.mxu0 0.0
    %129 = vmatprep.subr.mxu0 0.0
    %130 = vmatpush1.msra.mxu0 0.0
    %131 = vmatprep.subr.mxu0 0.0
    %132 = vmatpush1.msra.mxu0 0.0
    %133 = vmatprep.subr.mxu0 0.0
    %134 = vmatpush1.msra.mxu0 0.0
    %135 = vmatprep.mubr.f32.mxu0 0.0
    %136 = vmatmul.mubr.f32.gmra.mrb[0].mxu0 %v46
    %v137 = vpop.f32.mrb[0].mxu0
    %v138 = vadd.f32 %v69, %v137
    %v139 = vpop.f32.mrb[0].mxu0
    %140 = vmatprep.mubr.f32.mxu0 0.0
    %141 = vmatmul.mubr.f32.gmra.mrb[0].mxu0 %v47
    %v142 = vpop.f32.mrb[0].mxu0
    %v143 = vadd.f32 %v69, %v142
    %v144 = vpop.f32.mrb[0].mxu0
    %145 = vdwg.mxu0
    %v146 = vld [vmem:[#allocation5] sm:$0xff]
    %v147 = vld [vmem:[#allocation5 + $0x8] sm:$0xff]
    %v148 = vadd.f32 %v138, %v146
    %v149 = vadd.f32 %v143, %v147
    %150 = vst [vmem:[#allocation7] sm:$0xff] %v148
    %151 = vst [vmem:[#allocation7 + $0x8] sm:$0xff] %v149
    // Predicated region
    $region26: #{tpu_custom_call.1} parent=1 // pred_check
      _
    $region27: #{tpu_custom_call.1} parent=1 // pred_check_branch
      %153 = sbr.rel (0) target = $region29
    $region28: #{tpu_custom_call.1} parent=1 // pred_region
      %s155 = ssub.s32 256, 256
      %156 = vsyncadd [#allocation4], %s155
      %s157 = sshll.u32 [#allocation7], 4
      %s158 = int_to_ptr.vmem [resolvable:$true] %s157
      %163 = dma.vmem_to_hbm [thread:$0]  %s158, 256, %s4, [#allocation4], 128, 128, 8
    $region29: #{tpu_custom_call.1} parent=1 // pred_fallthru
      _
    // Predicated region
    $region30: #{tpu_custom_call.1} parent=1 // pred_check
      _
    $region31: #{tpu_custom_call.1} parent=1 // pred_check_branch
      %165 = sbr.rel (0) target = $region33
    $region32: #{tpu_custom_call.1} parent=1 // pred_region
      %166 = dma.done [#allocation4], 256
    $region33: #{tpu_custom_call.1} parent=1 // pred_fallthru
      _
    %167 = vsyncpa [#allocation3], 1
    %168 = vsyncpa [#allocation6], 1
    %169 = vsyncpa [#allocation4], 1

</llo_original>
